<compile_context>
chip_gen: v5e
topology: v5e:2x2
jax: 0.10.0
libtpu: 0.0.40
codegen_flags: <defaults>
</compile_context>

<pallas_src>
import math

import jax
import jax.numpy as jnp
from jax.experimental import pallas as pl
from jax.experimental.pallas import tpu as pltpu


# ----------------------------------------------------------------------------- kernel


def _make_kernel(L):
    def cnn_kernel(x_ref, w1_ref, t1_ref, w2_ref, t2_ref, w3_ref, t3_ref,
                   fcw_ref, fcb_ref, out_ref):
        R = x_ref.shape[0]           # flat rows in this tile (= TB * L)
        TB = R // L

        # Position-within-sequence masks over the flat row axis (built once, bool).
        # Rolling the flat row axis leaks rows across batch elements at l==0 /
        # l==L-1; these selects zero exactly those rows, which is also the
        # 'same'-padding zero.  Select (not multiply) so padded-garbage rows in a
        # partial last tile can never contaminate valid outputs.
        pos = jax.lax.broadcasted_iota(jnp.int32, (R, 1), 0) % L
        not_first = pos > 0                       # (R, 1) bool
        not_last = pos < (L - 1)                  # (R, 1) bool

        def conv_bn_relu(h, w_ref, t_ref):
            # h: (R, C) bf16.  w_ref: (3, C, Co) bf16, per-tap weights with BN
            # scale folded.  t_ref: (1, Co) f32 = conv bias + BN shift, folded.
            yp = jnp.dot(h, w_ref[0], preferred_element_type=jnp.float32)  # tap l-1
            yc = jnp.dot(h, w_ref[1], preferred_element_type=jnp.float32)  # tap l
            yn = jnp.dot(h, w_ref[2], preferred_element_type=jnp.float32)  # tap l+1
            y = (yc
                 + jnp.where(not_first, pltpu.roll(yp, 1, axis=0), 0.0)
                 + jnp.where(not_last, pltpu.roll(yn, R - 1, axis=0), 0.0))
            return jnp.maximum(y + t_ref[...], 0.0)       # BN shift + ReLU, f32

        x = x_ref[...]                                    # (R, Ci) bf16, no recast
        h1 = conv_bn_relu(x, w1_ref, t1_ref).astype(x.dtype)    # (R, 32) bf16
        h2 = conv_bn_relu(h1, w2_ref, t2_ref).astype(x.dtype)   # (R, 64) bf16
        h3 = conv_bn_relu(h2, w3_ref, t3_ref)                   # (R, 32) f32 (GAP only)

        # AdaptiveAvgPool1d(1): mean over L within each batch element.
        g = jnp.mean(h3.reshape(TB, L, -1), axis=1)              # (TB, 32) f32
        out_ref[...] = (jnp.dot(g, fcw_ref[...], preferred_element_type=jnp.float32)
                        + fcb_ref[...]).astype(out_ref.dtype)

    return cnn_kernel


# ----------------------------------------------------------------------------- wrapper


def _pick_batch_tile(B, L, target_rows=4096):
    # ~4096 rows/step: amortizes the ~0.35us grid-step overhead while keeping the
    # per-step working set (bf16 activations + f32 tap outputs, lane-padded) well
    # under v7x's 32 MiB scoped VMEM.  On v5e/v6e (128 MiB VMEM) sweep 8192-16384.
    tb = max(1, target_rows // max(L, 1))
    if tb < B:
        return max(8, (tb // 8) * 8)      # keep out-block sublane dim 8-aligned
    tb = B
    if B >= 16:
        # v7x megacore: guarantee >= 2 grid steps so the "parallel" batch axis
        # actually splits across both TensorCores (no effect on 1-TC v5e/v6e).
        half = ((B + 1) // 2 + 7) // 8 * 8
        if half < B:
            tb = half
    return tb


def _nbytes(a):
    return int(math.prod(a.shape)) * jnp.dtype(a.dtype).itemsize


def cnn_forward(x, params, *, mxu_dtype=jnp.bfloat16, batch_tile=None):
    B, L, Ci = x.shape
    NC = params["fcw"].shape[1]
    tb = batch_tile if batch_tile is not None else _pick_batch_tile(B, L)
    grid = (pl.cdiv(B, tb),)

    # Flat (B*L, Ci) bf16 input (2-D lane-friendly block, no 3-D sublane padding);
    # bf16 per-tap conv weights; f32 shifts / FC params.
    xq = x.reshape(B * L, Ci).astype(mxu_dtype)
    w1 = params["w1"].astype(mxu_dtype)
    w2 = params["w2"].astype(mxu_dtype)
    w3 = params["w3"].astype(mxu_dtype)
    t1, t2, t3 = params["t1"], params["t2"], params["t3"]
    fcw, fcb = params["fcw"], params["fcb"]

    def resident(a):
        # Same (full) block every grid step -> stays in VMEM, no re-DMA.
        if a.ndim == 3:
            return pl.BlockSpec(a.shape, lambda i: (0, 0, 0))
        return pl.BlockSpec(a.shape, lambda i: (0, 0))

    in_specs = [pl.BlockSpec((tb * L, Ci), lambda i: (i, 0))]
    in_specs += [resident(a) for a in (w1, t1, w2, t2, w3, t3, fcw, fcb)]
    out_specs = pl.BlockSpec((tb, NC), lambda i: (i, 0))

    flops = 2 * B * L * (3 * Ci * 32 + 3 * 32 * 64 + 3 * 64 * 32) + 2 * B * 32 * NC
    bytes_accessed = (_nbytes(xq) + B * NC * 4
                      + sum(_nbytes(a) for a in (w1, t1, w2, t2, w3, t3, fcw, fcb)))

    return pl.pallas_call(
        _make_kernel(L),
        grid=grid,
        in_specs=in_specs,
        out_specs=out_specs,
        out_shape=jax.ShapeDtypeStruct((B, NC), jnp.float32),
        compiler_params=pltpu.CompilerParams(
            dimension_semantics=("parallel",),     # batch tiles across TCs on v7x
            vmem_limit_bytes=32 * 1024 * 1024,     # safe on v5e/v6e/v7x; tiles << this
        ),
        cost_estimate=pl.CostEstimate(
            flops=int(flops), transcendentals=0, bytes_accessed=int(bytes_accessed)),
    )(xq, w1, t1, w2, t2, w3, t3, fcw, fcb)


# ----------------------------------------------------------------------------- params


def make_params(key, input_size=3, num_classes=3, eps=1e-5):
    """Builds per-tap conv weights with eval-mode BatchNorm folded in.

    PyTorch Conv1d weight (Co, Ci, K=3) -> stacked per-tap weights (3, Ci, Co)
    with BN scale folded per output channel; conv bias + BN shift folded into
    t (1, Co).
    """
    ks = jax.random.split(key, 14)
    params = {}

    def conv_bn(kw, kb, kg, kbt, ci, co, idx):
        fan_in = ci * 3
        bound = 1.0 / (fan_in ** 0.5)
        w = jax.random.uniform(kw, (co, ci, 3), jnp.float32, -bound, bound)
        b = jax.random.uniform(kb, (co,), jnp.float32, -bound, bound)
        gamma = 1.0 + 0.1 * jax.random.normal(kg, (co,), jnp.float32)
        beta = 0.1 * jax.random.normal(kbt, (co,), jnp.float32)
        rmean = jnp.zeros((co,), jnp.float32)
        rvar = jnp.ones((co,), jnp.float32)
        scale = gamma / jnp.sqrt(rvar + eps)                          # (Co,)
        w_taps = jnp.transpose(w, (2, 1, 0)) * scale[None, None, :]   # (3, Ci, Co)
        params[f"w{idx}"] = w_taps                                    # BN scale folded
        params[f"t{idx}"] = (beta + scale * (b - rmean)).reshape(1, -1)

    conv_bn(ks[0], ks[1], ks[2], ks[3], input_size, 32, 1)
    conv_bn(ks[4], ks[5], ks[6], ks[7], 32, 64, 2)
    conv_bn(ks[8], ks[9], ks[10], ks[11], 64, 32, 3)

    bound = 1.0 / (32.0 ** 0.5)
    fcw = jax.random.uniform(ks[12], (num_classes, 32), jnp.float32, -bound, bound)
    fcb = jax.random.uniform(ks[13], (num_classes,), jnp.float32, -bound, bound)
    params["fcw"] = fcw.T                     # (32, NC)
    params["fcb"] = fcb.reshape(1, -1)        # (1, NC)
    return params


# --------------------------------------------------------------------------- reference


def cnn_reference(x, params):
    """Pure-JAX f32 reference (same folded-BN parameters, channels-last)."""
    def layer(h, w_taps, t):
        B, L, C = h.shape
        z = jnp.zeros((B, 1, C), jnp.float32)
        prev = jnp.concatenate([z, h[:, :-1, :]], axis=1)     # h[l-1], zero-padded
        nxt = jnp.concatenate([h[:, 1:, :], z], axis=1)       # h[l+1], zero-padded
        y = (jnp.einsum("blc,cd->bld", prev, w_taps[0])
             + jnp.einsum("blc,cd->bld", h, w_taps[1])
             + jnp.einsum("blc,cd->bld", nxt, w_taps[2])) + t.reshape(1, 1, -1)
        return jnp.maximum(y, 0.0)

    h = layer(x, params["w1"], params["t1"])
    h = layer(h, params["w2"], params["t2"])
    h = layer(h, params["w3"], params["t3"])
    g = jnp.mean(h, axis=1)
    return g @ params["fcw"] + params["fcb"]


if __name__ == "__main__":
    key = jax.random.PRNGKey(0)
    kx, kp = jax.random.split(key)
    B, L, C_in, num_classes = 2, 16, 3, 3
    # Module's forward takes (B, L, C) and transposes to (B, C, L) internally; our
    # channels-last kernel computes the same values directly on (B, L, C).
    x = jax.random.normal(kx, (B, L, C_in), jnp.float32)
    params = make_params(kp, input_size=C_in, num_classes=num_classes)

    out = jax.block_until_ready(cnn_forward(x, params))
    assert out.shape == (B, num_classes)
    assert bool(jnp.all(jnp.isfinite(out)))

    ref = cnn_reference(x, params)
    err = float(jnp.max(jnp.abs(out - ref)))
    assert err < 1e-1, f"max |kernel - reference| = {err}"
    print("KERNEL_OK")
</pallas_src>

<mosaic_0001>
module attributes {stable_mosaic.version = 11 : i64} {
  func.func @cnn_kernel(%arg0: i32, %arg1: memref<32x3xbf16, #tpu.memory_space<vmem>>, %arg2: memref<3x3x32xbf16, #tpu.memory_space<vmem>>, %arg3: memref<1x32xf32, #tpu.memory_space<vmem>>, %arg4: memref<3x32x64xbf16, #tpu.memory_space<vmem>>, %arg5: memref<1x64xf32, #tpu.memory_space<vmem>>, %arg6: memref<3x64x32xbf16, #tpu.memory_space<vmem>>, %arg7: memref<1x32xf32, #tpu.memory_space<vmem>>, %arg8: memref<32x3xf32, #tpu.memory_space<vmem>>, %arg9: memref<1x3xf32, #tpu.memory_space<vmem>>, %arg10: memref<2x3xf32, #tpu.memory_space<vmem>>) attributes {dimension_semantics = [#tpu.dimension_semantics<parallel>], iteration_bounds = array<i64: 1>, scalar_prefetch = 0 : i64, scratch_operands = 0 : i64, tpu.core_type = #tpu.core_type<tc>, window_params = [{transform_indices = @transform_0, window_bounds = array<i64: 32, 3>}, {pipeline_mode = #tpu.pipeline_mode<synchronous>, transform_indices = @transform_1, window_bounds = array<i64: 3, 3, 32>}, {pipeline_mode = #tpu.pipeline_mode<synchronous>, transform_indices = @transform_2, window_bounds = array<i64: 1, 32>}, {pipeline_mode = #tpu.pipeline_mode<synchronous>, transform_indices = @transform_3, window_bounds = array<i64: 3, 32, 64>}, {pipeline_mode = #tpu.pipeline_mode<synchronous>, transform_indices = @transform_4, window_bounds = array<i64: 1, 64>}, {pipeline_mode = #tpu.pipeline_mode<synchronous>, transform_indices = @transform_5, window_bounds = array<i64: 3, 64, 32>}, {pipeline_mode = #tpu.pipeline_mode<synchronous>, transform_indices = @transform_6, window_bounds = array<i64: 1, 32>}, {pipeline_mode = #tpu.pipeline_mode<synchronous>, transform_indices = @transform_7, window_bounds = array<i64: 32, 3>}, {pipeline_mode = #tpu.pipeline_mode<synchronous>, transform_indices = @transform_8, window_bounds = array<i64: 1, 3>}, {transform_indices = @transform_9, window_bounds = array<i64: 2, 3>}]} {
    %0 = tpu.iota {dimensions = array<i32: 0>} : vector<32x1xi32>
    %c16_i32 = arith.constant 16 : i32
    %c0_i32 = arith.constant 0 : i32
    %1 = arith.cmpi eq, %c16_i32, %c0_i32 : i32
    %c1_i32 = arith.constant 1 : i32
    %2 = arith.select %1, %c1_i32, %c16_i32 : i32
    %3 = vector.broadcast %2 : i32 to vector<32x1xi32>
    %4 = arith.remsi %0, %3 : vector<32x1xi32>
    %c0_i32_0 = arith.constant 0 : i32
    %5 = vector.broadcast %c0_i32_0 : i32 to vector<32x1xi32>
    %6 = arith.cmpi ne, %4, %5 : vector<32x1xi32>
    %c0_i32_1 = arith.constant 0 : i32
    %7 = vector.broadcast %c0_i32_1 : i32 to vector<32x1xi32>
    %8 = arith.cmpi slt, %4, %7 : vector<32x1xi32>
    %c0_i32_2 = arith.constant 0 : i32
    %9 = arith.cmpi slt, %2, %c0_i32_2 : i32
    %10 = vector.broadcast %9 : i1 to vector<32x1xi1>
    %11 = vector.broadcast %10 : vector<32x1xi1> to vector<32x1xi1>
    %12 = arith.xori %8, %11 : vector<32x1xi1>
    %13 = arith.andi %12, %6 : vector<32x1xi1>
    %14 = vector.broadcast %2 : i32 to vector<32x1xi32>
    %15 = arith.addi %4, %14 : vector<32x1xi32>
    %16 = arith.select %13, %15, %4 : vector<32x1xi1>, vector<32x1xi32>
    %c0_i32_3 = arith.constant 0 : i32
    %17 = vector.broadcast %c0_i32_3 : i32 to vector<32x1xi32>
    %18 = arith.cmpi sgt, %16, %17 : vector<32x1xi32>
    %c15_i32 = arith.constant 15 : i32
    %19 = vector.broadcast %c15_i32 : i32 to vector<32x1xi32>
    %20 = arith.cmpi slt, %16, %19 : vector<32x1xi32>
    %c0 = arith.constant 0 : index
    %c0_4 = arith.constant 0 : index
    %21 = vector.load %arg1[%c0, %c0_4] : memref<32x3xbf16, #tpu.memory_space<vmem>>, vector<32x3xbf16>
    %c0_5 = arith.constant 0 : index
    %c0_6 = arith.constant 0 : index
    %c0_7 = arith.constant 0 : index
    %22 = vector.load %arg2[%c0_5, %c0_6, %c0_7] : memref<3x3x32xbf16, #tpu.memory_space<vmem>>, vector<1x3x32xbf16>
    %23 = vector.shape_cast %22 : vector<1x3x32xbf16> to vector<3x32xbf16>
    %cst = arith.constant dense<0.000000e+00> : vector<32x32xf32>
    %24 = tpu.matmul %21, %23, %cst {dimension_numbers = #tpu.dot_dimension_numbers<[1], [0], [0], [1], [0, 0, 1, 1], [], []>} : vector<32x3xbf16>, vector<3x32xbf16>, vector<32x32xf32> -> vector<32x32xf32>
    %c1 = arith.constant 1 : index
    %c0_8 = arith.constant 0 : index
    %c0_9 = arith.constant 0 : index
    %25 = vector.load %arg2[%c1, %c0_8, %c0_9] : memref<3x3x32xbf16, #tpu.memory_space<vmem>>, vector<1x3x32xbf16>
    %26 = vector.shape_cast %25 : vector<1x3x32xbf16> to vector<3x32xbf16>
    %cst_10 = arith.constant dense<0.000000e+00> : vector<32x32xf32>
    %27 = tpu.matmul %21, %26, %cst_10 {dimension_numbers = #tpu.dot_dimension_numbers<[1], [0], [0], [1], [0, 0, 1, 1], [], []>} : vector<32x3xbf16>, vector<3x32xbf16>, vector<32x32xf32> -> vector<32x32xf32>
    %c2 = arith.constant 2 : index
    %c0_11 = arith.constant 0 : index
    %c0_12 = arith.constant 0 : index
    %28 = vector.load %arg2[%c2, %c0_11, %c0_12] : memref<3x3x32xbf16, #tpu.memory_space<vmem>>, vector<1x3x32xbf16>
    %29 = vector.shape_cast %28 : vector<1x3x32xbf16> to vector<3x32xbf16>
    %cst_13 = arith.constant dense<0.000000e+00> : vector<32x32xf32>
    %30 = tpu.matmul %21, %29, %cst_13 {dimension_numbers = #tpu.dot_dimension_numbers<[1], [0], [0], [1], [0, 0, 1, 1], [], []>} : vector<32x3xbf16>, vector<3x32xbf16>, vector<32x32xf32> -> vector<32x32xf32>
    %c1_i32_14 = arith.constant 1 : i32
    %31 = tpu.dynamic_rotate %24 by %c1_i32_14 dim 0 : vector<32x32xf32>, i32 -> vector<32x32xf32>
    %cst_15 = arith.constant 0.000000e+00 : f32
    %32 = vector.shape_cast %18 : vector<32x1xi1> to vector<32x1xi1>
    %33 = vector.broadcast %32 : vector<32x1xi1> to vector<32x32xi1>
    %34 = vector.broadcast %cst_15 : f32 to vector<32x32xf32>
    %35 = arith.select %33, %31, %34 : vector<32x32xi1>, vector<32x32xf32>
    %36 = arith.addf %27, %35 : vector<32x32xf32>
    %c31_i32 = arith.constant 31 : i32
    %37 = tpu.dynamic_rotate %30 by %c31_i32 dim 0 : vector<32x32xf32>, i32 -> vector<32x32xf32>
    %cst_16 = arith.constant 0.000000e+00 : f32
    %38 = vector.shape_cast %20 : vector<32x1xi1> to vector<32x1xi1>
    %39 = vector.broadcast %38 : vector<32x1xi1> to vector<32x32xi1>
    %40 = vector.broadcast %cst_16 : f32 to vector<32x32xf32>
    %41 = arith.select %39, %37, %40 : vector<32x32xi1>, vector<32x32xf32>
    %42 = arith.addf %36, %41 : vector<32x32xf32>
    %c0_17 = arith.constant 0 : index
    %c0_18 = arith.constant 0 : index
    %43 = vector.load %arg3[%c0_17, %c0_18] : memref<1x32xf32, #tpu.memory_space<vmem>>, vector<1x32xf32>
    %44 = vector.broadcast %43 : vector<1x32xf32> to vector<32x32xf32>
    %45 = arith.addf %42, %44 : vector<32x32xf32>
    %cst_19 = arith.constant 0.000000e+00 : f32
    %46 = vector.broadcast %cst_19 : f32 to vector<32x32xf32>
    %47 = arith.maximumf %45, %46 : vector<32x32xf32>
    %48 = arith.truncf %47 : vector<32x32xf32> to vector<32x32xbf16>
    %c0_20 = arith.constant 0 : index
    %c0_21 = arith.constant 0 : index
    %c0_22 = arith.constant 0 : index
    %49 = vector.load %arg4[%c0_20, %c0_21, %c0_22] : memref<3x32x64xbf16, #tpu.memory_space<vmem>>, vector<1x32x64xbf16>
    %50 = vector.shape_cast %49 : vector<1x32x64xbf16> to vector<32x64xbf16>
    %cst_23 = arith.constant dense<0.000000e+00> : vector<32x64xf32>
    %51 = tpu.matmul %48, %50, %cst_23 {dimension_numbers = #tpu.dot_dimension_numbers<[1], [0], [0], [1], [0, 0, 1, 1], [], []>} : vector<32x32xbf16>, vector<32x64xbf16>, vector<32x64xf32> -> vector<32x64xf32>
    %c1_24 = arith.constant 1 : index
    %c0_25 = arith.constant 0 : index
    %c0_26 = arith.constant 0 : index
    %52 = vector.load %arg4[%c1_24, %c0_25, %c0_26] : memref<3x32x64xbf16, #tpu.memory_space<vmem>>, vector<1x32x64xbf16>
    %53 = vector.shape_cast %52 : vector<1x32x64xbf16> to vector<32x64xbf16>
    %cst_27 = arith.constant dense<0.000000e+00> : vector<32x64xf32>
    %54 = tpu.matmul %48, %53, %cst_27 {dimension_numbers = #tpu.dot_dimension_numbers<[1], [0], [0], [1], [0, 0, 1, 1], [], []>} : vector<32x32xbf16>, vector<32x64xbf16>, vector<32x64xf32> -> vector<32x64xf32>
    %c2_28 = arith.constant 2 : index
    %c0_29 = arith.constant 0 : index
    %c0_30 = arith.constant 0 : index
    %55 = vector.load %arg4[%c2_28, %c0_29, %c0_30] : memref<3x32x64xbf16, #tpu.memory_space<vmem>>, vector<1x32x64xbf16>
    %56 = vector.shape_cast %55 : vector<1x32x64xbf16> to vector<32x64xbf16>
    %cst_31 = arith.constant dense<0.000000e+00> : vector<32x64xf32>
    %57 = tpu.matmul %48, %56, %cst_31 {dimension_numbers = #tpu.dot_dimension_numbers<[1], [0], [0], [1], [0, 0, 1, 1], [], []>} : vector<32x32xbf16>, vector<32x64xbf16>, vector<32x64xf32> -> vector<32x64xf32>
    %c1_i32_32 = arith.constant 1 : i32
    %58 = tpu.dynamic_rotate %51 by %c1_i32_32 dim 0 : vector<32x64xf32>, i32 -> vector<32x64xf32>
    %cst_33 = arith.constant 0.000000e+00 : f32
    %59 = vector.shape_cast %18 : vector<32x1xi1> to vector<32x1xi1>
    %60 = vector.broadcast %59 : vector<32x1xi1> to vector<32x64xi1>
    %61 = vector.broadcast %cst_33 : f32 to vector<32x64xf32>
    %62 = arith.select %60, %58, %61 : vector<32x64xi1>, vector<32x64xf32>
    %63 = arith.addf %54, %62 : vector<32x64xf32>
    %c31_i32_34 = arith.constant 31 : i32
    %64 = tpu.dynamic_rotate %57 by %c31_i32_34 dim 0 : vector<32x64xf32>, i32 -> vector<32x64xf32>
    %cst_35 = arith.constant 0.000000e+00 : f32
    %65 = vector.shape_cast %20 : vector<32x1xi1> to vector<32x1xi1>
    %66 = vector.broadcast %65 : vector<32x1xi1> to vector<32x64xi1>
    %67 = vector.broadcast %cst_35 : f32 to vector<32x64xf32>
    %68 = arith.select %66, %64, %67 : vector<32x64xi1>, vector<32x64xf32>
    %69 = arith.addf %63, %68 : vector<32x64xf32>
    %c0_36 = arith.constant 0 : index
    %c0_37 = arith.constant 0 : index
    %70 = vector.load %arg5[%c0_36, %c0_37] : memref<1x64xf32, #tpu.memory_space<vmem>>, vector<1x64xf32>
    %71 = vector.broadcast %70 : vector<1x64xf32> to vector<32x64xf32>
    %72 = arith.addf %69, %71 : vector<32x64xf32>
    %cst_38 = arith.constant 0.000000e+00 : f32
    %73 = vector.broadcast %cst_38 : f32 to vector<32x64xf32>
    %74 = arith.maximumf %72, %73 : vector<32x64xf32>
    %75 = arith.truncf %74 : vector<32x64xf32> to vector<32x64xbf16>
    %c0_39 = arith.constant 0 : index
    %c0_40 = arith.constant 0 : index
    %c0_41 = arith.constant 0 : index
    %76 = vector.load %arg6[%c0_39, %c0_40, %c0_41] : memref<3x64x32xbf16, #tpu.memory_space<vmem>>, vector<1x64x32xbf16>
    %77 = vector.shape_cast %76 : vector<1x64x32xbf16> to vector<64x32xbf16>
    %cst_42 = arith.constant dense<0.000000e+00> : vector<32x32xf32>
    %78 = tpu.matmul %75, %77, %cst_42 {dimension_numbers = #tpu.dot_dimension_numbers<[1], [0], [0], [1], [0, 0, 1, 1], [], []>} : vector<32x64xbf16>, vector<64x32xbf16>, vector<32x32xf32> -> vector<32x32xf32>
    %c1_43 = arith.constant 1 : index
    %c0_44 = arith.constant 0 : index
    %c0_45 = arith.constant 0 : index
    %79 = vector.load %arg6[%c1_43, %c0_44, %c0_45] : memref<3x64x32xbf16, #tpu.memory_space<vmem>>, vector<1x64x32xbf16>
    %80 = vector.shape_cast %79 : vector<1x64x32xbf16> to vector<64x32xbf16>
    %cst_46 = arith.constant dense<0.000000e+00> : vector<32x32xf32>
    %81 = tpu.matmul %75, %80, %cst_46 {dimension_numbers = #tpu.dot_dimension_numbers<[1], [0], [0], [1], [0, 0, 1, 1], [], []>} : vector<32x64xbf16>, vector<64x32xbf16>, vector<32x32xf32> -> vector<32x32xf32>
    %c2_47 = arith.constant 2 : index
    %c0_48 = arith.constant 0 : index
    %c0_49 = arith.constant 0 : index
    %82 = vector.load %arg6[%c2_47, %c0_48, %c0_49] : memref<3x64x32xbf16, #tpu.memory_space<vmem>>, vector<1x64x32xbf16>
    %83 = vector.shape_cast %82 : vector<1x64x32xbf16> to vector<64x32xbf16>
    %cst_50 = arith.constant dense<0.000000e+00> : vector<32x32xf32>
    %84 = tpu.matmul %75, %83, %cst_50 {dimension_numbers = #tpu.dot_dimension_numbers<[1], [0], [0], [1], [0, 0, 1, 1], [], []>} : vector<32x64xbf16>, vector<64x32xbf16>, vector<32x32xf32> -> vector<32x32xf32>
    %c1_i32_51 = arith.constant 1 : i32
    %85 = tpu.dynamic_rotate %78 by %c1_i32_51 dim 0 : vector<32x32xf32>, i32 -> vector<32x32xf32>
    %cst_52 = arith.constant 0.000000e+00 : f32
    %86 = vector.shape_cast %18 : vector<32x1xi1> to vector<32x1xi1>
    %87 = vector.broadcast %86 : vector<32x1xi1> to vector<32x32xi1>
    %88 = vector.broadcast %cst_52 : f32 to vector<32x32xf32>
    %89 = arith.select %87, %85, %88 : vector<32x32xi1>, vector<32x32xf32>
    %90 = arith.addf %81, %89 : vector<32x32xf32>
    %c31_i32_53 = arith.constant 31 : i32
    %91 = tpu.dynamic_rotate %84 by %c31_i32_53 dim 0 : vector<32x32xf32>, i32 -> vector<32x32xf32>
    %cst_54 = arith.constant 0.000000e+00 : f32
    %92 = vector.shape_cast %20 : vector<32x1xi1> to vector<32x1xi1>
    %93 = vector.broadcast %92 : vector<32x1xi1> to vector<32x32xi1>
    %94 = vector.broadcast %cst_54 : f32 to vector<32x32xf32>
    %95 = arith.select %93, %91, %94 : vector<32x32xi1>, vector<32x32xf32>
    %96 = arith.addf %90, %95 : vector<32x32xf32>
    %c0_55 = arith.constant 0 : index
    %c0_56 = arith.constant 0 : index
    %97 = vector.load %arg7[%c0_55, %c0_56] : memref<1x32xf32, #tpu.memory_space<vmem>>, vector<1x32xf32>
    %98 = vector.broadcast %97 : vector<1x32xf32> to vector<32x32xf32>
    %99 = arith.addf %96, %98 : vector<32x32xf32>
    %cst_57 = arith.constant 0.000000e+00 : f32
    %100 = vector.broadcast %cst_57 : f32 to vector<32x32xf32>
    %101 = arith.maximumf %99, %100 : vector<32x32xf32>
    %102 = vector.shape_cast %101 : vector<32x32xf32> to vector<2x16x32xf32>
    %cst_58 = arith.constant dense<0.000000e+00> : vector<2x32xf32>
    %103 = vector.multi_reduction <add>, %102, %cst_58 [1] : vector<2x16x32xf32> to vector<2x32xf32>
    %cst_59 = arith.constant 1.600000e+01 : f32
    %104 = vector.broadcast %cst_59 : f32 to vector<2x32xf32>
    %105 = arith.divf %103, %104 : vector<2x32xf32>
    %c0_60 = arith.constant 0 : index
    %c0_61 = arith.constant 0 : index
    %106 = vector.load %arg8[%c0_60, %c0_61] : memref<32x3xf32, #tpu.memory_space<vmem>>, vector<32x3xf32>
    %cst_62 = arith.constant dense<0.000000e+00> : vector<2x3xf32>
    %107 = tpu.matmul %105, %106, %cst_62 {dimension_numbers = #tpu.dot_dimension_numbers<[1], [0], [0], [1], [0, 0, 1, 1], [], []>} : vector<2x32xf32>, vector<32x3xf32>, vector<2x3xf32> -> vector<2x3xf32>
    %c0_63 = arith.constant 0 : index
    %c0_64 = arith.constant 0 : index
    %108 = vector.load %arg9[%c0_63, %c0_64] : memref<1x3xf32, #tpu.memory_space<vmem>>, vector<1x3xf32>
    %109 = vector.broadcast %108 : vector<1x3xf32> to vector<2x3xf32>
    %110 = arith.addf %107, %109 : vector<2x3xf32>
    %c0_65 = arith.constant 0 : index
    %c0_66 = arith.constant 0 : index
    %111 = vector.load %arg10[%c0_65, %c0_66] : memref<2x3xf32, #tpu.memory_space<vmem>>, vector<2x3xf32>
    tpu.vector_store %arg10[%c0_65, %c0_66], %110 {strides = array<i32>} : memref<2x3xf32, #tpu.memory_space<vmem>>, vector<2x3xf32>,
    return
  }
  func.func @transform_0(%arg0: i32) -> (i32, i32) {
    %c0_i32 = arith.constant 0 : i32
    %c0_i32_0 = arith.constant 0 : i32
    return %arg0, %c0_i32 : i32, i32
  }
  func.func @transform_1(%arg0: i32) -> (i32, i32, i32) {
    %c0_i32 = arith.constant 0 : i32
    %c0_i32_0 = arith.constant 0 : i32
    %c0_i32_1 = arith.constant 0 : i32
    %c0_i32_2 = arith.constant 0 : i32
    return %c0_i32, %c0_i32_0, %c0_i32_1 : i32, i32, i32
  }
  func.func @transform_2(%arg0: i32) -> (i32, i32) {
    %c0_i32 = arith.constant 0 : i32
    %c0_i32_0 = arith.constant 0 : i32
    %c0_i32_1 = arith.constant 0 : i32
    return %c0_i32, %c0_i32_0 : i32, i32
  }
  func.func @transform_3(%arg0: i32) -> (i32, i32, i32) {
    %c0_i32 = arith.constant 0 : i32
    %c0_i32_0 = arith.constant 0 : i32
    %c0_i32_1 = arith.constant 0 : i32
    %c0_i32_2 = arith.constant 0 : i32
    return %c0_i32, %c0_i32_0, %c0_i32_1 : i32, i32, i32
  }
  func.func @transform_4(%arg0: i32) -> (i32, i32) {
    %c0_i32 = arith.constant 0 : i32
    %c0_i32_0 = arith.constant 0 : i32
    %c0_i32_1 = arith.constant 0 : i32
    return %c0_i32, %c0_i32_0 : i32, i32
  }
  func.func @transform_5(%arg0: i32) -> (i32, i32, i32) {
    %c0_i32 = arith.constant 0 : i32
    %c0_i32_0 = arith.constant 0 : i32
    %c0_i32_1 = arith.constant 0 : i32
    %c0_i32_2 = arith.constant 0 : i32
    return %c0_i32, %c0_i32_0, %c0_i32_1 : i32, i32, i32
  }
  func.func @transform_6(%arg0: i32) -> (i32, i32) {
    %c0_i32 = arith.constant 0 : i32
    %c0_i32_0 = arith.constant 0 : i32
    %c0_i32_1 = arith.constant 0 : i32
    return %c0_i32, %c0_i32_0 : i32, i32
  }
  func.func @transform_7(%arg0: i32) -> (i32, i32) {
    %c0_i32 = arith.constant 0 : i32
    %c0_i32_0 = arith.constant 0 : i32
    %c0_i32_1 = arith.constant 0 : i32
    return %c0_i32, %c0_i32_0 : i32, i32
  }
  func.func @transform_8(%arg0: i32) -> (i32, i32) {
    %c0_i32 = arith.constant 0 : i32
    %c0_i32_0 = arith.constant 0 : i32
    %c0_i32_1 = arith.constant 0 : i32
    return %c0_i32, %c0_i32_0 : i32, i32
  }
  func.func @transform_9(%arg0: i32) -> (i32, i32) {
    %c0_i32 = arith.constant 0 : i32
    %c0_i32_0 = arith.constant 0 : i32
    return %arg0, %c0_i32 : i32, i32
  }
}

</mosaic_0001>

<llo_original>
// kernel: tpu_custom_call.1
$region0: #{tpu_custom_call.1}
  #allocation0 [shape = 'u32[]', space=smem, size = 0x4, offset = 0x4, fixed_abs, tag = 'smem constant byte address 0x4 - core index']
  #allocation1 [shape = 'u32[72,128]{1,0:T(1,128)}', space=vmem, size = 0x9000, scoped, tag = 'internal scratch']
  %s0 = inlined_call_operand.vmem [shape: bf16[32,3], index: 0, kind: input, shape index: {}]
  %s1 = inlined_call_operand.vmem [shape: bf16[3,3,32], index: 1, kind: input, shape index: {}]
  %s2 = inlined_call_operand.vmem [shape: f32[1,32], index: 2, kind: input, shape index: {}]
  %s3 = inlined_call_operand.vmem [shape: bf16[3,32,64], index: 3, kind: input, shape index: {}]
  %s4 = inlined_call_operand.vmem [shape: f32[1,64], index: 4, kind: input, shape index: {}]
  %s5 = inlined_call_operand.vmem [shape: bf16[3,64,32], index: 5, kind: input, shape index: {}]
  %s6 = inlined_call_operand.vmem [shape: f32[1,32], index: 6, kind: input, shape index: {}]
  %s7 = inlined_call_operand.vmem [shape: f32[32,3], index: 7, kind: input, shape index: {}]
  %s8 = inlined_call_operand.vmem [shape: f32[1,3], index: 8, kind: input, shape index: {}]
  %s9 = inlined_call_operand.hbm [shape: f32[2,3], index: 9, kind: output, shape index: {}]
  %s10 = sld [smem:[#allocation0]]
  $region46: #{tpu_custom_call.1} parent=0
    _
  %s12 = ssub.s32 1, %s10
  %s13 = scalar_select 0, %s12, %s10
  $region1: #{tpu_custom_call.1} parent=0
    #allocation2 [shape = 'u8[1024]{0}', space=vmem, size = 0x400, scoped, tag = 'output window, operand 0, single buffered']
    #allocation3 [shape = 's32[1]{0}', space=sflag, size = 0x4, scoped, tag = 'scoped memory for tpu_custom_call.1']
    %14 = vsyncpa [#allocation3], 0
    // Predicated region
    $region2: #{tpu_custom_call.1} parent=1 // pred_check
      _
    $region3: #{tpu_custom_call.1} parent=1 // pred_check_branch
      %16 = sbr.rel (0) target = $region5
    $region4: #{tpu_custom_call.1} parent=1 // pred_region
      _
    $region5: #{tpu_custom_call.1} parent=1 // pred_fallthru
      _
    // Predicated region
    $region6: #{tpu_custom_call.1} parent=1 // pred_check
      _
    $region7: #{tpu_custom_call.1} parent=1 // pred_check_branch
      %18 = sbr.rel (0) target = $region9
    $region8: #{tpu_custom_call.1} parent=1 // pred_region
      _
    $region9: #{tpu_custom_call.1} parent=1 // pred_fallthru
      _
    // Predicated region
    $region10: #{tpu_custom_call.1} parent=1 // pred_check
      _
    $region11: #{tpu_custom_call.1} parent=1 // pred_check_branch
      %20 = sbr.rel (0) target = $region13
    $region12: #{tpu_custom_call.1} parent=1 // pred_region
      _
    $region13: #{tpu_custom_call.1} parent=1 // pred_fallthru
      _
    // Predicated region
    $region14: #{tpu_custom_call.1} parent=1 // pred_check
      _
    $region15: #{tpu_custom_call.1} parent=1 // pred_check_branch
      %22 = sbr.rel (0) target = $region17
    $region16: #{tpu_custom_call.1} parent=1 // pred_region
      _
    $region17: #{tpu_custom_call.1} parent=1 // pred_fallthru
      _
    // Predicated region
    $region18: #{tpu_custom_call.1} parent=1 // pred_check
      _
    $region19: #{tpu_custom_call.1} parent=1 // pred_check_branch
      %24 = sbr.rel (0) target = $region21
    $region20: #{tpu_custom_call.1} parent=1 // pred_region
      _
    $region21: #{tpu_custom_call.1} parent=1 // pred_fallthru
      _
    // Predicated region
    $region22: #{tpu_custom_call.1} parent=1 // pred_check
      _
    $region23: #{tpu_custom_call.1} parent=1 // pred_check_branch
      %26 = sbr.rel (0) target = $region25
    $region24: #{tpu_custom_call.1} parent=1 // pred_region
      _
    $region25: #{tpu_custom_call.1} parent=1 // pred_fallthru
      _
    // Predicated region
    $region26: #{tpu_custom_call.1} parent=1 // pred_check
      _
    $region27: #{tpu_custom_call.1} parent=1 // pred_check_branch
      %28 = sbr.rel (0) target = $region29
    $region28: #{tpu_custom_call.1} parent=1 // pred_region
      _
    $region29: #{tpu_custom_call.1} parent=1 // pred_fallthru
      _
    // Predicated region
    $region30: #{tpu_custom_call.1} parent=1 // pred_check
      _
    $region31: #{tpu_custom_call.1} parent=1 // pred_check_branch
      %30 = sbr.rel (0) target = $region33
    $region32: #{tpu_custom_call.1} parent=1 // pred_region
      _
    $region33: #{tpu_custom_call.1} parent=1 // pred_fallthru
      _
    // Predicated region
    $region34: #{tpu_custom_call.1} parent=1 // pred_check
      _
    $region35: #{tpu_custom_call.1} parent=1 // pred_check_branch
      %32 = sbr.rel (0) target = $region37
    $region36: #{tpu_custom_call.1} parent=1 // pred_region
      _
    $region37: #{tpu_custom_call.1} parent=1 // pred_fallthru
      _
    %v34 = vlaneseq
    %v35 = vshrl.u32 %v34, 7
    %v36 = vadd.s32 %v35, 8
    %v37 = vadd.s32 %v35, 16
    %v38 = vadd.s32 %v35, 24
    %vm39 = vcmp.lt.s32.totalorder %v35, 0
    %v40 = vsub.s32 0, %v35
    %v41 = vsel %vm39, %v40, %v35
    %v42 = vshrl.u32 %v41, 4
    %v43 = vand.u32 %v41, 15
    %v44 = vsub.s32 0, %v43
    %v45 = vsel %vm39, %v44, %v43
    %vm46 = vcmp.lt.s32.totalorder %v36, 0
    %v47 = vsub.s32 0, %v36
    %v48 = vsel %vm46, %v47, %v36
    %v49 = vshrl.u32 %v48, 4
    %v50 = vand.u32 %v48, 15
    %v51 = vsub.s32 0, %v50
    %v52 = vsel %vm46, %v51, %v50
    %vm53 = vcmp.lt.s32.totalorder %v37, 0
    %v54 = vsub.s32 0, %v37
    %v55 = vsel %vm53, %v54, %v37
    %v56 = vshrl.u32 %v55, 4
    %v57 = vand.u32 %v55, 15
    %v58 = vsub.s32 0, %v57
    %v59 = vsel %vm53, %v58, %v57
    %vm60 = vcmp.lt.s32.totalorder %v38, 0
    %v61 = vsub.s32 0, %v38
    %v62 = vsel %vm60, %v61, %v38
    %v63 = vshrl.u32 %v62, 4
    %v64 = vand.u32 %v62, 15
    %v65 = vsub.s32 0, %v64
    %v66 = vsel %vm60, %v65, %v64
    %vm67 = vcmp.ne.s32.totalorder %v45, 0
    %vm68 = vcmp.ne.s32.totalorder %v52, 0
    %vm69 = vcmp.ne.s32.totalorder %v59, 0
    %vm70 = vcmp.ne.s32.totalorder %v66, 0
    %vm71 = vcmp.lt.s32.totalorder %v45, 0
    %vm72 = vcmp.lt.s32.totalorder %v52, 0
    %vm73 = vcmp.lt.s32.totalorder %v59, 0
    %vm74 = vcmp.lt.s32.totalorder %v66, 0
    %vm75 = vmand %vm71, %vm67
    %vm76 = vmand %vm72, %vm68
    %vm77 = vmand %vm73, %vm69
    %vm78 = vmand %vm74, %vm70
    %v79 = vadd.s32 %v45, 16
    %v80 = vadd.s32 %v52, 16
    %v81 = vadd.s32 %v59, 16
    %v82 = vadd.s32 %v66, 16
    %v83 = vsel %vm75, %v79, %v45
    %v84 = vsel %vm76, %v80, %v52
    %v85 = vsel %vm77, %v81, %v59
    %v86 = vsel %vm78, %v82, %v66
    %vm87 = vcmp.gt.s32.totalorder %v83, 0
    %vm88 = vcmp.gt.s32.totalorder %v84, 0
    %vm89 = vcmp.gt.s32.totalorder %v85, 0
    %vm90 = vcmp.gt.s32.totalorder %v86, 0
    %vm91 = vcmp.lt.s32.totalorder %v83, 15
    %vm92 = vcmp.lt.s32.totalorder %v84, 15
    %vm93 = vcmp.lt.s32.totalorder %v85, 15
    %vm94 = vcmp.lt.s32.totalorder %v86, 15
    %v95 = vld [vmem:[%s0] sm:$0xf]
    %v96 = vld [vmem:[%s0 + $0x4] sm:$0xf]
    %v97 = vld [vmem:[%s0 + $0x8] sm:$0xf]
    %v98 = vld [vmem:[%s0 + $0xc] sm:$0xf]
    %v99 = vld [vmem:[%s1] sm:$0x3]
    %v104 = vunpack.c.l.b16 %v95
    %v105 = vunpack.c.l.b16 %v96
    %v106 = vunpack.c.l.b16 %v97
    %v107 = vunpack.c.l.b16 %v98
    %v108 = vpack.c.b16 %v105, %v104
    %v109 = vpack.c.b16 %v107, %v106
    %vm110 = vcmask 23552
    %v112 = vsel %vm110, %v108, 0
    %v115 = vsel %vm110, %v109, 0
    %vm117 = vcmask 1040384
    %vm118 = vcmask 1041408
    %v119 = vsel %vm117, 4294967295, 65535
    %v120 = vsel %vm118, %v119, 0
    %v122 = vand.u32 %v99, %v120
    %124 = vmatpush.bf16.msra.mxu0 0
    %125 = vmatpush.bf16.msra.mxu0 0
    %126 = vmatpush.bf16.msra.mxu0 0
    %127 = vmatpush.bf16.msra.mxu0 0
    %128 = vmatpush.bf16.msra.mxu0 0
    %129 = vmatpush.bf16.msra.mxu0 0
    %130 = vmatpush.bf16.msra.mxu0 0
    %131 = vmatpush.bf16.msra.mxu0 %v122
    %132 = vmatmul.bf16.gmra.mxu0 %v112
    %v133 = vpop.f32.mrf.mxu0
    %v134 = vadd.f32 0.0, %v133
    %v135 = vpop.f32.mrf.mxu0
    %v136 = vadd.f32 0.0, %v135
    %137 = vmatmul.bf16.gmra.mxu0 %v115
    %v138 = vpop.f32.mrf.mxu0
    %v139 = vadd.f32 0.0, %v138
    %v140 = vpop.f32.mrf.mxu0
    %v141 = vadd.f32 0.0, %v140
    %142 = vdwg.mxu0
    %s143 = scalar_lea.vmem %s1, 2
    %v144 = vld [vmem:[%s143] sm:$0x3]
    %s145 = scalar_lea.vmem %s1, 4
    %v146 = vld [vmem:[%s145] sm:$0x3]
    %v148 = vand.u32 %v146, %v120
    %150 = vmatpush.bf16.msra.mxu0 0
    %151 = vmatpush.bf16.msra.mxu0 0
    %152 = vmatpush.bf16.msra.mxu0 0
    %153 = vmatpush.bf16.msra.mxu0 0
    %154 = vmatpush.bf16.msra.mxu0 0
    %155 = vmatpush.bf16.msra.mxu0 0
    %156 = vmatpush.bf16.msra.mxu0 0
    %157 = vmatpush.bf16.msra.mxu0 %v148
    %158 = vmatmul.bf16.gmra.mxu0 %v112
    %v159 = vpop.f32.mrf.mxu0
    %v160 = vadd.f32 0.0, %v159
    %v161 = vpop.f32.mrf.mxu0
    %v162 = vadd.f32 0.0, %v161
    %163 = vmatmul.bf16.gmra.mxu0 %v115
    %v164 = vpop.f32.mrf.mxu0
    %v165 = vadd.f32 0.0, %v164
    %v166 = vpop.f32.mrf.mxu0
    %v167 = vadd.f32 0.0, %v166
    %168 = vdwg.mxu0
    %v169 = vrot.slane %v134, 7
    %v170 = vrot.slane %v136, 7
    %v171 = vrot.slane %v139, 7
    %v172 = vrot.slane %v141, 7
    %vm173 = vcmp.lt.s32.totalorder %v35, 1
    %v174 = vsel %vm173, %v171, %v172
    %v175 = vsel %vm173, %v170, %v171
    %v176 = vsel %vm173, %v169, %v170
    %v177 = vsel %vm173, %v172, %v169
    %v178 = vsel %vm87, 1, 0
    %v179 = vsel %vm88, 1, 0
    %v180 = vsel %vm89, 1, 0
    %v181 = vsel %vm90, 1, 0
    %vm182 = vcmp.eq.s32.totalorder %v178, 1
    %vm183 = vcmp.eq.s32.totalorder %v179, 1
    %vm184 = vcmp.eq.s32.totalorder %v180, 1
    %vm185 = vcmp.eq.s32.totalorder %v181, 1
    %v186 = vsel %vm182, %v177, 0.0
    %v187 = vsel %vm183, %v176, 0.0
    %v188 = vsel %vm184, %v175, 0.0
    %v189 = vsel %vm185, %v174, 0.0
    %v191 = vand.u32 %v144, %v120
    %193 = vmatpush.bf16.msra.mxu0 0
    %194 = vmatpush.bf16.msra.mxu0 0
    %195 = vmatpush.bf16.msra.mxu0 0
    %196 = vmatpush.bf16.msra.mxu0 0
    %197 = vmatpush.bf16.msra.mxu0 0
    %198 = vmatpush.bf16.msra.mxu0 0
    %199 = vmatpush.bf16.msra.mxu0 0
    %200 = vmatpush.bf16.msra.mxu0 %v191
    %201 = vmatmul.bf16.gmra.mxu0 %v112
    %v202 = vpop.f32.mrf.mxu0
    %v203 = vadd.f32 %v186, %v202
    %v204 = vpop.f32.mrf.mxu0
    %v205 = vadd.f32 %v187, %v204
    %206 = vmatmul.bf16.gmra.mxu0 %v115
    %v207 = vpop.f32.mrf.mxu0
    %v208 = vadd.f32 %v188, %v207
    %v209 = vpop.f32.mrf.mxu0
    %v210 = vadd.f32 %v189, %v209
    %211 = vdwg.mxu0
    %v212 = vrot.slane %v160, 1
    %v213 = vrot.slane %v162, 1
    %v214 = vrot.slane %v165, 1
    %v215 = vrot.slane %v167, 1
    %vm216 = vcmp.lt.s32.totalorder %v35, 7
    %v217 = vsel %vm216, %v214, %v215
    %v218 = vsel %vm216, %v213, %v214
    %v219 = vsel %vm216, %v212, %v213
    %v220 = vsel %vm216, %v215, %v212
    %v221 = vsel %vm91, 1, 0
    %v222 = vsel %vm92, 1, 0
    %v223 = vsel %vm93, 1, 0
    %v224 = vsel %vm94, 1, 0
    %vm225 = vcmp.eq.s32.totalorder %v221, 1
    %vm226 = vcmp.eq.s32.totalorder %v222, 1
    %vm227 = vcmp.eq.s32.totalorder %v223, 1
    %vm228 = vcmp.eq.s32.totalorder %v224, 1
    %v229 = vsel %vm225, %v219, 0.0
    %v230 = vsel %vm226, %v218, 0.0
    %v231 = vsel %vm227, %v217, 0.0
    %v232 = vsel %vm228, %v220, 0.0
    %v233 = vadd.f32 %v203, %v229
    %v234 = vadd.f32 %v205, %v230
    %v235 = vadd.f32 %v208, %v231
    %v236 = vadd.f32 %v210, %v232
    %v237 = vld [vmem:[%s2] sm:$0x1]
    %v239 = vperm.slane %v237, 0
    %v241 = vadd.f32 %v233, %v239
    %v242 = vadd.f32 %v234, %v239
    %v243 = vadd.f32 %v235, %v239
    %v244 = vadd.f32 %v236, %v239
    %v245 = vmax.f32 %v241, 0.0
    %v246 = vmax.f32 %v242, 0.0
    %v247 = vmax.f32 %v243, 0.0
    %v248 = vmax.f32 %v244, 0.0
    %v249 = vpack.c.bf16 %v246, %v245
    %v250 = vpack.c.bf16 %v248, %v247
    %v251 = vld [vmem:[%s3] sm:$0xf]
    %v252 = vld [vmem:[%s3 + $0x4] sm:$0xf]
    %v253 = vld [vmem:[%s3 + $0x8] sm:$0xf]
    %v254 = vld [vmem:[%s3 + $0xc] sm:$0xf]
    %v259 = vunpack.c.l.b16 %v251
    %v260 = vunpack.c.l.b16 %v252
    %v261 = vunpack.c.l.b16 %v253
    %v262 = vunpack.c.l.b16 %v254
    %v263 = vpack.c.b16 %v260, %v259
    %v264 = vpack.c.b16 %v262, %v261
    %vm267 = vcmask 261120
    %v269 = vsel %vm267, %v249, 0
    %v272 = vsel %vm267, %v250, 0
    %274 = vmatpush.bf16.msra.mxu0 0
    %275 = vmatpush.bf16.msra.mxu0 0
    %276 = vmatpush.bf16.msra.mxu0 0
    %277 = vmatpush.bf16.msra.mxu0 0
    %278 = vmatpush.bf16.msra.mxu0 0
    %279 = vmatpush.bf16.msra.mxu0 0
    %280 = vmatpush.bf16.msra.mxu0 %v264
    %281 = vmatpush.bf16.msra.mxu0 %v263
    %282 = vmatmul.bf16.gmra.mxu0 %v269
    %v283 = vpop.f32.mrf.mxu0
    %v284 = vadd.f32 0.0, %v283
    %v285 = vpop.f32.mrf.mxu0
    %v286 = vadd.f32 0.0, %v285
    %287 = vmatmul.bf16.gmra.mxu0 %v272
    %v288 = vpop.f32.mrf.mxu0
    %v289 = vadd.f32 0.0, %v288
    %v290 = vpop.f32.mrf.mxu0
    %v291 = vadd.f32 0.0, %v290
    %292 = vdwg.mxu0
    %s293 = scalar_lea.vmem %s3, 16
    %v294 = vld [vmem:[%s293] sm:$0xf]
    %v295 = vld [vmem:[%s293 + $0x4] sm:$0xf]
    %v296 = vld [vmem:[%s293 + $0x8] sm:$0xf]
    %v297 = vld [vmem:[%s293 + $0xc] sm:$0xf]
    %s298 = scalar_lea.vmem %s3, 32
    %v299 = vld [vmem:[%s298] sm:$0xf]
    %v300 = vld [vmem:[%s298 + $0x4] sm:$0xf]
    %v301 = vld [vmem:[%s298 + $0x8] sm:$0xf]
    %v302 = vld [vmem:[%s298 + $0xc] sm:$0xf]
    %v307 = vunpack.c.l.b16 %v299
    %v308 = vunpack.c.l.b16 %v300
    %v309 = vunpack.c.l.b16 %v301
    %v310 = vunpack.c.l.b16 %v302
    %v311 = vpack.c.b16 %v308, %v307
    %v312 = vpack.c.b16 %v310, %v309
    %315 = vmatpush.bf16.msra.mxu0 0
    %316 = vmatpush.bf16.msra.mxu0 0
    %317 = vmatpush.bf16.msra.mxu0 0
    %318 = vmatpush.bf16.msra.mxu0 0
    %319 = vmatpush.bf16.msra.mxu0 0
    %320 = vmatpush.bf16.msra.mxu0 0
    %321 = vmatpush.bf16.msra.mxu0 %v312
    %322 = vmatpush.bf16.msra.mxu0 %v311
    %323 = vmatmul.bf16.gmra.mxu0 %v269
    %v324 = vpop.f32.mrf.mxu0
    %v325 = vadd.f32 0.0, %v324
    %v326 = vpop.f32.mrf.mxu0
    %v327 = vadd.f32 0.0, %v326
    %328 = vmatmul.bf16.gmra.mxu0 %v272
    %v329 = vpop.f32.mrf.mxu0
    %v330 = vadd.f32 0.0, %v329
    %v331 = vpop.f32.mrf.mxu0
    %v332 = vadd.f32 0.0, %v331
    %333 = vdwg.mxu0
    %v334 = vrot.slane %v284, 7
    %v335 = vrot.slane %v286, 7
    %v336 = vrot.slane %v289, 7
    %v337 = vrot.slane %v291, 7
    %v338 = vsel %vm173, %v336, %v337
    %v339 = vsel %vm173, %v335, %v336
    %v340 = vsel %vm173, %v334, %v335
    %v341 = vsel %vm173, %v337, %v334
    %v342 = vsel %vm182, %v341, 0.0
    %v343 = vsel %vm183, %v340, 0.0
    %v344 = vsel %vm184, %v339, 0.0
    %v345 = vsel %vm185, %v338, 0.0
    %v350 = vunpack.c.l.b16 %v294
    %v351 = vunpack.c.l.b16 %v295
    %v352 = vunpack.c.l.b16 %v296
    %v353 = vunpack.c.l.b16 %v297
    %v354 = vpack.c.b16 %v351, %v350
    %v355 = vpack.c.b16 %v353, %v352
    %358 = vmatpush.bf16.msra.mxu0 0
    %359 = vmatpush.bf16.msra.mxu0 0
    %360 = vmatpush.bf16.msra.mxu0 0
    %361 = vmatpush.bf16.msra.mxu0 0
    %362 = vmatpush.bf16.msra.mxu0 0
    %363 = vmatpush.bf16.msra.mxu0 0
    %364 = vmatpush.bf16.msra.mxu0 %v355
    %365 = vmatpush.bf16.msra.mxu0 %v354
    %366 = vmatmul.bf16.gmra.mxu0 %v269
    %v367 = vpop.f32.mrf.mxu0
    %v368 = vadd.f32 %v342, %v367
    %v369 = vpop.f32.mrf.mxu0
    %v370 = vadd.f32 %v343, %v369
    %371 = vmatmul.bf16.gmra.mxu0 %v272
    %v372 = vpop.f32.mrf.mxu0
    %v373 = vadd.f32 %v344, %v372
    %v374 = vpop.f32.mrf.mxu0
    %v375 = vadd.f32 %v345, %v374
    %376 = vdwg.mxu0
    %v377 = vrot.slane %v325, 1
    %v378 = vrot.slane %v327, 1
    %v379 = vrot.slane %v330, 1
    %v380 = vrot.slane %v332, 1
    %v381 = vsel %vm216, %v379, %v380
    %v382 = vsel %vm216, %v378, %v379
    %v383 = vsel %vm216, %v377, %v378
    %v384 = vsel %vm216, %v380, %v377
    %v385 = vsel %vm225, %v383, 0.0
    %v386 = vsel %vm226, %v382, 0.0
    %v387 = vsel %vm227, %v381, 0.0
    %v388 = vsel %vm228, %v384, 0.0
    %v389 = vadd.f32 %v368, %v385
    %v390 = vadd.f32 %v370, %v386
    %v391 = vadd.f32 %v373, %v387
    %v392 = vadd.f32 %v375, %v388
    %v393 = vld [vmem:[%s4] sm:$0x1]
    %v395 = vperm.slane %v393, 0
    %v397 = vadd.f32 %v389, %v395
    %v398 = vadd.f32 %v390, %v395
    %v399 = vadd.f32 %v391, %v395
    %v400 = vadd.f32 %v392, %v395
    %v401 = vmax.f32 %v397, 0.0
    %v402 = vmax.f32 %v398, 0.0
    %v403 = vmax.f32 %v399, 0.0
    %v404 = vmax.f32 %v400, 0.0
    %v405 = vpack.c.bf16 %v402, %v401
    %v406 = vpack.c.bf16 %v404, %v403
    %v407 = vld [vmem:[%s5] sm:$0xf]
    %v408 = vld [vmem:[%s5 + $0x4] sm:$0xf]
    %v409 = vld [vmem:[%s5 + $0x8] sm:$0xf]
    %v410 = vld [vmem:[%s5 + $0xc] sm:$0xf]
    %v411 = vld [vmem:[%s5 + $0x10] sm:$0xf]
    %v412 = vld [vmem:[%s5 + $0x14] sm:$0xf]
    %v413 = vld [vmem:[%s5 + $0x18] sm:$0xf]
    %v414 = vld [vmem:[%s5 + $0x1c] sm:$0xf]
    %v423 = vunpack.c.l.b16 %v407
    %v424 = vunpack.c.l.b16 %v408
    %v425 = vunpack.c.l.b16 %v409
    %v426 = vunpack.c.l.b16 %v410
    %v427 = vunpack.c.l.b16 %v411
    %v428 = vunpack.c.l.b16 %v412
    %v429 = vunpack.c.l.b16 %v413
    %v430 = vunpack.c.l.b16 %v414
    %v431 = vpack.c.b16 %v424, %v423
    %v432 = vpack.c.b16 %v426, %v425
    %v433 = vpack.c.b16 %v428, %v427
    %v434 = vpack.c.b16 %v430, %v429
    %vm439 = vcmask 523264
    %v441 = vsel %vm439, %v405, 0
    %v444 = vsel %vm439, %v406, 0
    %446 = vmatpush.bf16.msra.mxu0 0
    %447 = vmatpush.bf16.msra.mxu0 0
    %448 = vmatpush.bf16.msra.mxu0 0
    %449 = vmatpush.bf16.msra.mxu0 0
    %450 = vmatpush.bf16.msra.mxu0 %v434
    %451 = vmatpush.bf16.msra.mxu0 %v433
    %452 = vmatpush.bf16.msra.mxu0 %v432
    %453 = vmatpush.bf16.msra.mxu0 %v431
    %454 = vmatmul.bf16.gmra.mxu0 %v441
    %v455 = vpop.f32.mrf.mxu0
    %v456 = vadd.f32 0.0, %v455
    %v457 = vpop.f32.mrf.mxu0
    %v458 = vadd.f32 0.0, %v457
    %459 = vmatmul.bf16.gmra.mxu0 %v444
    %v460 = vpop.f32.mrf.mxu0
    %v461 = vadd.f32 0.0, %v460
    %v462 = vpop.f32.mrf.mxu0
    %v463 = vadd.f32 0.0, %v462
    %464 = vdwg.mxu0
    %s465 = scalar_lea.vmem %s5, 32
    %v466 = vld [vmem:[%s465] sm:$0xf]
    %v467 = vld [vmem:[%s465 + $0x4] sm:$0xf]
    %v468 = vld [vmem:[%s465 + $0x8] sm:$0xf]
    %v469 = vld [vmem:[%s465 + $0xc] sm:$0xf]
    %v470 = vld [vmem:[%s465 + $0x10] sm:$0xf]
    %v471 = vld [vmem:[%s465 + $0x14] sm:$0xf]
    %v472 = vld [vmem:[%s465 + $0x18] sm:$0xf]
    %v473 = vld [vmem:[%s465 + $0x1c] sm:$0xf]
    %s474 = scalar_lea.vmem %s5, 64
    %v475 = vld [vmem:[%s474] sm:$0xf]
    %v476 = vld [vmem:[%s474 + $0x4] sm:$0xf]
    %v477 = vld [vmem:[%s474 + $0x8] sm:$0xf]
    %v478 = vld [vmem:[%s474 + $0xc] sm:$0xf]
    %v479 = vld [vmem:[%s474 + $0x10] sm:$0xf]
    %v480 = vld [vmem:[%s474 + $0x14] sm:$0xf]
    %v481 = vld [vmem:[%s474 + $0x18] sm:$0xf]
    %v482 = vld [vmem:[%s474 + $0x1c] sm:$0xf]
    %v491 = vunpack.c.l.b16 %v475
    %v492 = vunpack.c.l.b16 %v476
    %v493 = vunpack.c.l.b16 %v477
    %v494 = vunpack.c.l.b16 %v478
    %v495 = vunpack.c.l.b16 %v479
    %v496 = vunpack.c.l.b16 %v480
    %v497 = vunpack.c.l.b16 %v481
    %v498 = vunpack.c.l.b16 %v482
    %v499 = vpack.c.b16 %v492, %v491
    %v500 = vpack.c.b16 %v494, %v493
    %v501 = vpack.c.b16 %v496, %v495
    %v502 = vpack.c.b16 %v498, %v497
    %507 = vmatpush.bf16.msra.mxu0 0
    %508 = vmatpush.bf16.msra.mxu0 0
    %509 = vmatpush.bf16.msra.mxu0 0
    %510 = vmatpush.bf16.msra.mxu0 0
    %511 = vmatpush.bf16.msra.mxu0 %v502
    %512 = vmatpush.bf16.msra.mxu0 %v501
    %513 = vmatpush.bf16.msra.mxu0 %v500
    %514 = vmatpush.bf16.msra.mxu0 %v499
    %515 = vmatmul.bf16.gmra.mxu0 %v441
    %v516 = vpop.f32.mrf.mxu0
    %v517 = vadd.f32 0.0, %v516
    %v518 = vpop.f32.mrf.mxu0
    %v519 = vadd.f32 0.0, %v518
    %520 = vmatmul.bf16.gmra.mxu0 %v444
    %v521 = vpop.f32.mrf.mxu0
    %v522 = vadd.f32 0.0, %v521
    %v523 = vpop.f32.mrf.mxu0
    %v524 = vadd.f32 0.0, %v523
    %525 = vdwg.mxu0
    %v526 = vrot.slane %v456, 7
    %v527 = vrot.slane %v458, 7
    %v528 = vrot.slane %v461, 7
    %v529 = vrot.slane %v463, 7
    %v530 = vsel %vm173, %v528, %v529
    %v531 = vsel %vm173, %v527, %v528
    %v532 = vsel %vm173, %v526, %v527
    %v533 = vsel %vm173, %v529, %v526
    %v534 = vsel %vm182, %v533, 0.0
    %v535 = vsel %vm183, %v532, 0.0
    %v536 = vsel %vm184, %v531, 0.0
    %v537 = vsel %vm185, %v530, 0.0
    %v546 = vunpack.c.l.b16 %v466
    %v547 = vunpack.c.l.b16 %v467
    %v548 = vunpack.c.l.b16 %v468
    %v549 = vunpack.c.l.b16 %v469
    %v550 = vunpack.c.l.b16 %v470
    %v551 = vunpack.c.l.b16 %v471
    %v552 = vunpack.c.l.b16 %v472
    %v553 = vunpack.c.l.b16 %v473
    %v554 = vpack.c.b16 %v547, %v546
    %v555 = vpack.c.b16 %v549, %v548
    %v556 = vpack.c.b16 %v551, %v550
    %v557 = vpack.c.b16 %v553, %v552
    %562 = vmatpush.bf16.msra.mxu0 0
    %563 = vmatpush.bf16.msra.mxu0 0
    %564 = vmatpush.bf16.msra.mxu0 0
    %565 = vmatpush.bf16.msra.mxu0 0
    %566 = vmatpush.bf16.msra.mxu0 %v557
    %567 = vmatpush.bf16.msra.mxu0 %v556
    %568 = vmatpush.bf16.msra.mxu0 %v555
    %569 = vmatpush.bf16.msra.mxu0 %v554
    %570 = vmatmul.bf16.gmra.mxu0 %v441
    %v571 = vpop.f32.mrf.mxu0
    %v572 = vadd.f32 %v534, %v571
    %v573 = vpop.f32.mrf.mxu0
    %v574 = vadd.f32 %v535, %v573
    %575 = vmatmul.bf16.gmra.mxu0 %v444
    %v576 = vpop.f32.mrf.mxu0
    %v577 = vadd.f32 %v536, %v576
    %v578 = vpop.f32.mrf.mxu0
    %v579 = vadd.f32 %v537, %v578
    %580 = vdwg.mxu0
    %v581 = vrot.slane %v517, 1
    %v582 = vrot.slane %v519, 1
    %v583 = vrot.slane %v522, 1
    %v584 = vrot.slane %v524, 1
    %v585 = vsel %vm216, %v583, %v584
    %v586 = vsel %vm216, %v582, %v583
    %v587 = vsel %vm216, %v581, %v582
    %v588 = vsel %vm216, %v584, %v581
    %v589 = vsel %vm225, %v587, 0.0
    %v590 = vsel %vm226, %v586, 0.0
    %v591 = vsel %vm227, %v585, 0.0
    %v592 = vsel %vm228, %v588, 0.0
    %v593 = vadd.f32 %v572, %v589
    %v594 = vadd.f32 %v574, %v590
    %v595 = vadd.f32 %v577, %v591
    %v596 = vadd.f32 %v579, %v592
    %v597 = vld [vmem:[%s6] sm:$0x1]
    %v599 = vperm.slane %v597, 0
    %v601 = vadd.f32 %v593, %v599
    %v602 = vadd.f32 %v594, %v599
    %v603 = vadd.f32 %v595, %v599
    %v604 = vadd.f32 %v596, %v599
    %v605 = vmax.f32 %v601, 0.0
    %v606 = vmax.f32 %v602, 0.0
    %v607 = vmax.f32 %v603, 0.0
    %v608 = vmax.f32 %v604, 0.0
    %v609 = vsel %vm267, %v605, 0.0
    %v610 = vsel %vm267, %v606, 0.0
    %v611 = vadd.f32 %v609, %v610
    %v612 = vrot.slane %v611, 4
    %v613 = vadd.f32 %v611, %v612
    %v614 = vrot.slane %v613, 2
    %v615 = vadd.f32 %v613, %v614
    %v616 = vrot.slane %v615, 1
    %v617 = vadd.f32 %v615, %v616
    %v618 = vsel %vm267, %v607, 0.0
    %v619 = vsel %vm267, %v608, 0.0
    %v620 = vadd.f32 %v618, %v619
    %v621 = vrot.slane %v620, 4
    %v622 = vadd.f32 %v620, %v621
    %v623 = vrot.slane %v622, 2
    %v624 = vadd.f32 %v622, %v623
    %v625 = vrot.slane %v624, 1
    %v626 = vadd.f32 %v624, %v625
    %v627 = vrcp.pop 16.0
    %v628 = vmul.f32 16.0, %v627
    %v629 = vsub.f32 1.0, %v628
    %v630 = vmul.f32 %v627, %v629
    %v631 = vadd.f32 %v627, %v630
    %vm632 = vweird.f32 %v627
    %v633 = vsel %vm632, %v627, %v631
    %v634 = vmul.f32 %v617, %v633
    %v635 = vmul.f32 %v626, %v633
    %v636 = vld [vmem:[%s7] sm:$0xff]
    %v637 = vld [vmem:[%s7 + $0x8] sm:$0xff]
    %v638 = vld [vmem:[%s7 + $0x10] sm:$0xff]
    %v639 = vld [vmem:[%s7 + $0x18] sm:$0xff]
    %v640 = vld [vmem:[%s8] sm:$0x1]
    %v642 = vperm.slane %v640, 0
    %vm646 = vcmask 1041409
    %v647 = vsel %vm646, %v635, %v634
    %v648 = vsel %vm267, %v647, 0
    %650 = vmatpush.msra.mxu0 0.0
    %651 = vmatpush.msra.mxu0 0.0
    %652 = vmatpush.msra.mxu0 0.0
    %653 = vmatpush.msra.mxu0 0.0
    %654 = vmatpush.msra.mxu0 0.0
    %655 = vmatpush.msra.mxu0 0.0
    %656 = vmatpush.msra.mxu0 0.0
    %657 = vmatpush.msra.mxu0 0.0
    %658 = vmatpush.msra.mxu0 0.0
    %659 = vmatpush.msra.mxu0 0.0
    %660 = vmatpush.msra.mxu0 0.0
    %661 = vmatpush.msra.mxu0 0.0
    %662 = vmatpush.msra.mxu0 %v639
    %663 = vmatpush.msra.mxu0 %v638
    %664 = vmatpush.msra.mxu0 %v637
    %665 = vmatpush.msra.mxu0 %v636
    %666 = vmatmul.f32.gmra.mxu0 %v648
    %v667 = vpop.f32.mrf.mxu0
    %v668 = vadd.f32 %v642, %v667
    %669 = vdwg.mxu0
    %vm670 = vcmask 17408
    %671 = vst.msk [vmem:[#allocation2] sm:$0x3] %vm670, %v668
    // Predicated region
    $region38: #{tpu_custom_call.1} parent=1 // pred_check
      _
    $region39: #{tpu_custom_call.1} parent=1 // pred_check_branch
      %673 = sbr.rel (0) target = $region41
    $region40: #{tpu_custom_call.1} parent=1 // pred_region
      %675 = vsyncadd [#allocation3], 0
      %s677 = sshll.u32 [#allocation2], 4
      %s678 = int_to_ptr.vmem [resolvable:$true] %s677
      %s679 = sshll.u32 %s9, 4
      %s680 = int_to_ptr.hbm [resolvable:$true] %s679
      %682 = dma.vmem_to_hbm [thread:$0]  %s678, 32, %s680, [#allocation3]
    $region41: #{tpu_custom_call.1} parent=1 // pred_fallthru
      _
    // Predicated region
    $region42: #{tpu_custom_call.1} parent=1 // pred_check
      _
    $region43: #{tpu_custom_call.1} parent=1 // pred_check_branch
      %684 = sbr.rel (0) target = $region45
    $region44: #{tpu_custom_call.1} parent=1 // pred_region
      %686 = dma.done [#allocation3], 32
    $region45: #{tpu_custom_call.1} parent=1 // pred_fallthru
      _
    %687 = vsyncpa [#allocation3], 1

</llo_original>
